<compile_context>
chip_gen: v5e
topology: v5e:2x2
jax: 0.10.0
libtpu: 0.0.40
codegen_flags: <defaults>
</compile_context>

<pallas_src>
import functools

import jax
import jax.numpy as jnp
from jax.experimental import pallas as pl
from jax.experimental.pallas import tpu as pltpu


_LANE = 128
_MIB = 1024 * 1024
_HEADROOM = 2 * _MIB                       # Mosaic internal-scratch headroom


def _vmem_capacity_bytes() -> int:
    """Physical VMEM of the attached TPU; conservative 64 MiB fallback."""
    try:
        return int(pltpu.get_tpu_info().vmem_capacity_bytes)
    except Exception:
        return 64 * _MIB


_VMEM_CAPACITY = _vmem_capacity_bytes()
# ~38 / 50 / 32 MiB on v7x (64 MiB VMEM); ~77 / 100 / 64 MiB on v5e/v6e (128 MiB).
_VMEM_BUDGET = int(_VMEM_CAPACITY * 0.60)
_VMEM_LIMIT = int(_VMEM_CAPACITY * 0.78)
_RESIDENT_W_MAX = int(_VMEM_CAPACITY * 0.50)


def _sublane(dtype) -> int:
    """Minimum second-to-last tile dim for this dtype (8 f32 / 16 bf16 / 32 int8)."""
    return max(8, 32 // jnp.dtype(dtype).itemsize)


def _round_rows(tm, n, sub):
    """Clamp/align a row tile: multiple of `sub` unless it covers all rows."""
    tm = int(min(tm, n))
    if tm < n:
        tm = max(sub, (tm // sub) * sub)
    return tm


def _balance_rows(tm, n, sub, min_steps=4):
    """Prefer >= min_steps row-grid steps (>= 2 per v7x TC) when N allows."""
    tm = int(tm)
    steps = (n + tm - 1) // tm
    if steps < min_steps and n >= min_steps * sub:
        tm = (n + min_steps - 1) // min_steps
    return tm


# ---------------------------------------------------------------------------
# Kernels (weight already transposed to (H_in, H_out) by the wrapper).
# ---------------------------------------------------------------------------

def _mlp_kernel_resident(x_ref, w_ref, b_ref, o_ref, *, demote):
    # x_ref: (tm, Hp)  w_ref: (Hp, Hp)  b_ref: (1, Hp) f32  o_ref: (tm, Hp)
    x = x_ref[...]
    if demote and x.dtype == jnp.float32:
        x = x.astype(jnp.bfloat16)
    y = jnp.dot(x, w_ref[...], preferred_element_type=jnp.float32) + b_ref[...]
    o_ref[...] = jnp.maximum(y, 0.0).astype(o_ref.dtype)


def _mlp_kernel_ktiled(x_ref, w_ref, b_ref, o_ref, acc_ref, *, demote):
    # grid = (row tiles, K tiles); acc_ref: (tm, Hp) f32 scratch.
    k = pl.program_id(1)

    @pl.when(k == 0)
    def _():
        acc_ref[...] = jnp.zeros_like(acc_ref)

    x = x_ref[...]
    if demote and x.dtype == jnp.float32:
        x = x.astype(jnp.bfloat16)
    acc_ref[...] += jnp.dot(x, w_ref[...], preferred_element_type=jnp.float32)

    @pl.when(k == pl.num_programs(1) - 1)
    def _():
        y = acc_ref[...] + b_ref[...]
        o_ref[...] = jnp.maximum(y, 0.0).astype(o_ref.dtype)


# ---------------------------------------------------------------------------
# Static (trace-time) tile selection.
# ---------------------------------------------------------------------------

def _pick_tm_resident(n, hp, xbytes, wbytes, sub):
    budget = _VMEM_BUDGET - _HEADROOM
    resident = hp * hp * wbytes + hp * 4            # Buffered(1) W + f32 bias
    # x + out double-buffered, plus the (tm, hp) f32 matmul/epilogue intermediate
    per_row = 2 * hp * xbytes + 2 * hp * xbytes + hp * 4
    avail = max(budget - resident, per_row * sub)
    tm = min(1024, avail // per_row)
    return _balance_rows(tm, n, sub)


def _pick_tiles_ktiled(n, hp, xbytes, wbytes, sub, tm, tk):
    budget = _VMEM_BUDGET - _HEADROOM
    if tk is None:
        # Prefer deep K tiles: the (tm, hp) f32 accumulator is re-read/re-written
        # once per K step, so bigger tk directly cuts vst/vld traffic + step count.
        tk = _LANE
        for cand in (1024, 512, 256, 128):
            if hp % cand == 0 and 2 * hp * cand * wbytes <= budget // 2:
                tk = cand
                break
    if hp % tk != 0:
        raise ValueError(f"tk={tk} must divide the (padded) hidden dim {hp}")
    if tm is None:
        w_slice = 2 * hp * tk * wbytes                         # double-buffered W slice
        # x + out double-buffered + f32 accumulator + f32 epilogue temp
        per_row = 2 * tk * xbytes + 2 * hp * xbytes + 2 * hp * 4
        avail = max(budget - w_slice, per_row * sub)
        tm = min(2048, avail // per_row)
        tm = _balance_rows(tm, n, sub)
    return tm, int(tk)


# ---------------------------------------------------------------------------
# Wrapper.
# ---------------------------------------------------------------------------

@functools.partial(jax.jit, static_argnames=("tm", "tk", "demote_to_bf16"))
def pointwise_mlp(x, weight, bias, *, tm=None, tk=None, demote_to_bf16=False):
    """relu(x @ weight.T + bias) over the last axis of x (PyTorch PointWiseMLP).

    x:      (..., H)
    weight: (H, H)   -- PyTorch nn.Linear layout (out_features, in_features)
    bias:   (H,)
    tm:     optional row tile (rounded down to the sublane multiple)
    tk:     optional K tile; if given, forces the K-tiled accumulator kernel
    demote_to_bf16: cast W (wrapper) and x tiles (in-kernel) to bf16; f32 epilogue
    """
    h = x.shape[-1]
    if weight.shape != (h, h) or bias.shape != (h,):
        raise ValueError("weight must be (H, H) and bias (H,)")

    orig_shape = x.shape
    x2d = x.reshape(-1, h)
    n = x2d.shape[0]

    # One-time transpose to (H_in, H_out): both kernels contract x's last axis
    # with W's first axis (MXU-native), and K-slices of W are contiguous rows.
    wt = weight.T
    if demote_to_bf16 and wt.dtype == jnp.float32:
        wt = wt.astype(jnp.bfloat16)

    xbytes = x2d.dtype.itemsize
    wbytes = wt.dtype.itemsize
    sub = _sublane(x2d.dtype)

    # Resident-W vs K-tiled decision (generation-aware threshold).
    hp_aligned = pl.cdiv(h, _LANE) * _LANE
    use_ktiling = (tk is not None) or (hp_aligned * hp_aligned * wbytes > _RESIDENT_W_MAX)

    hp = h
    if use_ktiling and hp_aligned != h:
        # Rare: ragged H that also needs K-tiling -> pad W/bias/x.  Padded input
        # columns / weight rows contribute exactly zero; padded output columns
        # (bias 0 -> relu 0) are sliced off afterwards.
        hp = hp_aligned
        pad = hp - h
        x2d = jnp.pad(x2d, ((0, 0), (0, pad)))
        wt = jnp.pad(wt, ((0, pad), (0, pad)))
        bias = jnp.pad(bias, (0, pad))
    # When the resident path handles a ragged H we do NOT pad the activations:
    # full-extent last-dim blocks avoid two extra HBM round trips over x/out.

    b2d = bias.astype(jnp.float32).reshape(1, hp)   # f32 epilogue (v5e-friendly)

    if not use_ktiling:
        tm_sel = _pick_tm_resident(n, hp, xbytes, wbytes, sub) if tm is None else tm
        tm_sel = _round_rows(tm_sel, n, sub)
        tk_sel = None
    else:
        tm_sel, tk_sel = _pick_tiles_ktiled(n, hp, xbytes, wbytes, sub, tm, tk)
        tm_sel = _round_rows(tm_sel, n, sub)

    n_row_tiles = pl.cdiv(n, tm_sel)
    w_passes = 1 if tk_sel is None else n_row_tiles
    cost = pl.CostEstimate(
        flops=2 * n * hp * hp,
        transcendentals=0,
        bytes_accessed=(n * hp * xbytes                 # x read
                        + w_passes * hp * hp * wbytes   # W (re-)streamed
                        + hp * 4                        # bias
                        + n * hp * xbytes),             # out write
    )
    compiler_params = pltpu.CompilerParams(
        dimension_semantics=("parallel",) if tk_sel is None else ("parallel", "arbitrary"),
        vmem_limit_bytes=_VMEM_LIMIT,
    )

    if tk_sel is None:
        # Resident-weight kernel: W/bias single-buffered, rows pipelined.
        out2d = pl.pallas_call(
            functools.partial(_mlp_kernel_resident, demote=demote_to_bf16),
            out_shape=jax.ShapeDtypeStruct((n, hp), x.dtype),
            grid_spec=pltpu.PrefetchScalarGridSpec(
                num_scalar_prefetch=0,
                grid=(n_row_tiles,),
                in_specs=[
                    pl.BlockSpec((tm_sel, hp), lambda i: (i, 0)),
                    pl.BlockSpec((hp, hp), lambda i: (0, 0),
                                 pipeline_mode=pl.Buffered(1)),
                    pl.BlockSpec((1, hp), lambda i: (0, 0),
                                 pipeline_mode=pl.Buffered(1)),
                ],
                out_specs=pl.BlockSpec((tm_sel, hp), lambda i: (i, 0)),
            ),
            compiler_params=compiler_params,
            cost_estimate=cost,
        )(x2d, wt, b2d)
    else:
        # K-tiled accumulator kernel for weights too large to keep resident.
        out2d = pl.pallas_call(
            functools.partial(_mlp_kernel_ktiled, demote=demote_to_bf16),
            out_shape=jax.ShapeDtypeStruct((n, hp), x.dtype),
            grid_spec=pltpu.PrefetchScalarGridSpec(
                num_scalar_prefetch=0,
                grid=(n_row_tiles, hp // tk_sel),
                in_specs=[
                    pl.BlockSpec((tm_sel, tk_sel), lambda i, k: (i, k)),
                    pl.BlockSpec((tk_sel, hp), lambda i, k: (k, 0)),
                    pl.BlockSpec((1, hp), lambda i, k: (0, 0),
                                 pipeline_mode=pl.Buffered(1)),
                ],
                out_specs=pl.BlockSpec((tm_sel, hp), lambda i, k: (i, 0)),
                scratch_shapes=[pltpu.VMEM((tm_sel, hp), jnp.float32)],
            ),
            compiler_params=compiler_params,
            cost_estimate=cost,
        )(x2d, wt, b2d)

    if hp != h:
        out2d = out2d[:, :h]
    return out2d.reshape(orig_shape)


def init_params(key, hidden_dim, dtype=jnp.float32):
    """Deterministic init mimicking nn.Linear defaults."""
    kw, kb = jax.random.split(key)
    bound = 1.0 / jnp.sqrt(hidden_dim)
    weight = jax.random.uniform(kw, (hidden_dim, hidden_dim), dtype,
                                minval=-bound, maxval=bound)
    bias = jax.random.uniform(kb, (hidden_dim,), dtype,
                              minval=-bound, maxval=bound)
    return weight, bias


if __name__ == "__main__":
    key = jax.random.PRNGKey(0)
    k_x1, k_p1, k_x2, k_p2 = jax.random.split(key, 4)

    # ---- Case 1: module-sized demo (H=32, not lane-aligned -> no-pad resident path) ----
    hidden_dim = 32
    x1 = jax.random.normal(k_x1, (2, 8, hidden_dim), jnp.float32)
    w1, b1 = init_params(k_p1, hidden_dim)
    out1 = jax.block_until_ready(pointwise_mlp(x1, w1, b1))
    ref1 = jnp.maximum(jnp.einsum("bsh,oh->bso", x1, w1) + b1, 0.0)
    assert out1.shape == x1.shape
    assert jnp.allclose(out1, ref1, atol=1e-4, rtol=1e-4)

    # ---- Case 2: exercise resident, forced K-tiled, and bf16-demoted paths ----
    hidden_dim2 = 256
    x2 = jax.random.normal(k_x2, (128, hidden_dim2), jnp.float32)
    w2, b2 = init_params(k_p2, hidden_dim2)
    out2_res = jax.block_until_ready(pointwise_mlp(x2, w2, b2))                  # resident W
    out2_kt = jax.block_until_ready(pointwise_mlp(x2, w2, b2, tm=64, tk=128))    # forced K-tiling
    out2_bf = jax.block_until_ready(pointwise_mlp(x2, w2, b2, demote_to_bf16=True))
    ref2 = jnp.maximum(x2 @ w2.T + b2, 0.0)
    # tight check: both f32 kernels agree up to f32 accumulation-order noise
    assert jnp.allclose(out2_kt, out2_res, atol=1e-4, rtol=1e-4)
    # loose check vs XLA reference (absorbs MXU default-precision differences)
    assert jnp.allclose(out2_res, ref2, atol=1e-2, rtol=1e-2)
    # very loose check for the opt-in bf16 demotion path
    assert jnp.allclose(out2_bf, ref2, atol=1e-1, rtol=1e-1)

    print("KERNEL_OK")
</pallas_src>

<mosaic_0001>
module attributes {stable_mosaic.version = 11 : i64} {
  func.func @_mlp_kernel_resident(%arg0: i32, %arg1: memref<16x32xf32, #tpu.memory_space<vmem>>, %arg2: memref<32x32xf32, #tpu.memory_space<vmem>>, %arg3: memref<1x32xf32, #tpu.memory_space<vmem>>, %arg4: memref<16x32xf32, #tpu.memory_space<vmem>>) attributes {dimension_semantics = [#tpu.dimension_semantics<parallel>], iteration_bounds = array<i64: 1>, scalar_prefetch = 0 : i64, scratch_operands = 0 : i64, tpu.core_type = #tpu.core_type<tc>, window_params = [{transform_indices = @transform_0, window_bounds = array<i64: 16, 32>}, {pipeline_mode = #tpu.pipeline_mode<synchronous>, transform_indices = @transform_1, window_bounds = array<i64: 32, 32>}, {pipeline_mode = #tpu.pipeline_mode<synchronous>, transform_indices = @transform_2, window_bounds = array<i64: 1, 32>}, {transform_indices = @transform_3, window_bounds = array<i64: 16, 32>}]} {
    %c0 = arith.constant 0 : index
    %c0_0 = arith.constant 0 : index
    %0 = vector.load %arg1[%c0, %c0_0] : memref<16x32xf32, #tpu.memory_space<vmem>>, vector<16x32xf32>
    %c0_1 = arith.constant 0 : index
    %c0_2 = arith.constant 0 : index
    %1 = vector.load %arg2[%c0_1, %c0_2] : memref<32x32xf32, #tpu.memory_space<vmem>>, vector<32x32xf32>
    %cst = arith.constant dense<0.000000e+00> : vector<16x32xf32>
    %2 = tpu.matmul %0, %1, %cst {dimension_numbers = #tpu.dot_dimension_numbers<[1], [0], [0], [1], [0, 0, 1, 1], [], []>} : vector<16x32xf32>, vector<32x32xf32>, vector<16x32xf32> -> vector<16x32xf32>
    %c0_3 = arith.constant 0 : index
    %c0_4 = arith.constant 0 : index
    %3 = vector.load %arg3[%c0_3, %c0_4] : memref<1x32xf32, #tpu.memory_space<vmem>>, vector<1x32xf32>
    %4 = vector.broadcast %3 : vector<1x32xf32> to vector<16x32xf32>
    %5 = arith.addf %2, %4 : vector<16x32xf32>
    %cst_5 = arith.constant 0.000000e+00 : f32
    %6 = vector.broadcast %cst_5 : f32 to vector<16x32xf32>
    %7 = arith.maximumf %5, %6 : vector<16x32xf32>
    %c0_6 = arith.constant 0 : index
    %c0_7 = arith.constant 0 : index
    %8 = vector.load %arg4[%c0_6, %c0_7] : memref<16x32xf32, #tpu.memory_space<vmem>>, vector<16x32xf32>
    tpu.vector_store %arg4[%c0_6, %c0_7], %7 {strides = array<i32>} : memref<16x32xf32, #tpu.memory_space<vmem>>, vector<16x32xf32>,
    return
  }
  func.func @transform_0(%arg0: i32) -> (i32, i32) {
    %c0_i32 = arith.constant 0 : i32
    %c0_i32_0 = arith.constant 0 : i32
    return %arg0, %c0_i32 : i32, i32
  }
  func.func @transform_1(%arg0: i32) -> (i32, i32) {
    %c0_i32 = arith.constant 0 : i32
    %c0_i32_0 = arith.constant 0 : i32
    %c0_i32_1 = arith.constant 0 : i32
    return %c0_i32, %c0_i32_0 : i32, i32
  }
  func.func @transform_2(%arg0: i32) -> (i32, i32) {
    %c0_i32 = arith.constant 0 : i32
    %c0_i32_0 = arith.constant 0 : i32
    %c0_i32_1 = arith.constant 0 : i32
    return %c0_i32, %c0_i32_0 : i32, i32
  }
  func.func @transform_3(%arg0: i32) -> (i32, i32) {
    %c0_i32 = arith.constant 0 : i32
    %c0_i32_0 = arith.constant 0 : i32
    return %arg0, %c0_i32 : i32, i32
  }
}

</mosaic_0001>

<llo_original>
// kernel: pointwise_mlp.1
$region0: #{pointwise_mlp.1}
  #allocation0 [shape = 'u32[]', space=smem, size = 0x4, offset = 0x4, fixed_abs, tag = 'smem constant byte address 0x4 - core index']
  #allocation1 [shape = 'u32[72,128]{1,0:T(1,128)}', space=vmem, size = 0x9000, scoped, tag = 'internal scratch']
  %s0 = inlined_call_operand.vmem [shape: f32[16,32], index: 0, kind: input, shape index: {}]
  %s1 = inlined_call_operand.vmem [shape: f32[32,32], index: 1, kind: input, shape index: {}]
  %s2 = inlined_call_operand.vmem [shape: f32[1,32], index: 2, kind: input, shape index: {}]
  %s3 = inlined_call_operand.hbm [shape: f32[16,32], index: 3, kind: output, shape index: {}]
  %s4 = sld [smem:[#allocation0]]
  $region22: #{pointwise_mlp.1} parent=0
    _
  %s6 = ssub.s32 1, %s4
  %s7 = scalar_select 0, %s6, %s4
  $region1: #{pointwise_mlp.1} parent=0
    #allocation2 [shape = 'u8[8192]{0}', space=vmem, size = 0x2000, scoped, tag = 'output window, operand 0, single buffered']
    #allocation3 [shape = 's32[1]{0}', space=sflag, size = 0x4, scoped, tag = 'scoped memory for pointwise_mlp.1']
    %8 = vsyncpa [#allocation3], 0
    // Predicated region
    $region2: #{pointwise_mlp.1} parent=1 // pred_check
      _
    $region3: #{pointwise_mlp.1} parent=1 // pred_check_branch
      %10 = sbr.rel (0) target = $region5
    $region4: #{pointwise_mlp.1} parent=1 // pred_region
      _
    $region5: #{pointwise_mlp.1} parent=1 // pred_fallthru
      _
    // Predicated region
    $region6: #{pointwise_mlp.1} parent=1 // pred_check
      _
    $region7: #{pointwise_mlp.1} parent=1 // pred_check_branch
      %12 = sbr.rel (0) target = $region9
    $region8: #{pointwise_mlp.1} parent=1 // pred_region
      _
    $region9: #{pointwise_mlp.1} parent=1 // pred_fallthru
      _
    // Predicated region
    $region10: #{pointwise_mlp.1} parent=1 // pred_check
      _
    $region11: #{pointwise_mlp.1} parent=1 // pred_check_branch
      %14 = sbr.rel (0) target = $region13
    $region12: #{pointwise_mlp.1} parent=1 // pred_region
      _
    $region13: #{pointwise_mlp.1} parent=1 // pred_fallthru
      _
    %v15 = vld [vmem:[%s0] sm:$0xff]
    %v16 = vld [vmem:[%s0 + $0x8] sm:$0xff]
    %v17 = vld [vmem:[%s1] sm:$0xff]
    %v18 = vld [vmem:[%s1 + $0x8] sm:$0xff]
    %v19 = vld [vmem:[%s1 + $0x10] sm:$0xff]
    %v20 = vld [vmem:[%s1 + $0x18] sm:$0xff]
    %v21 = vld [vmem:[%s2] sm:$0x1]
    %v23 = vperm.slane %v21, 0
    %vm25 = vcmask 261120
    %v27 = vsel %vm25, %v15, 0
    %v30 = vsel %vm25, %v16, 0
    %32 = vmatpush.msra.mxu0 0.0
    %33 = vmatpush.msra.mxu0 0.0
    %34 = vmatpush.msra.mxu0 0.0
    %35 = vmatpush.msra.mxu0 0.0
    %36 = vmatpush.msra.mxu0 0.0
    %37 = vmatpush.msra.mxu0 0.0
    %38 = vmatpush.msra.mxu0 0.0
    %39 = vmatpush.msra.mxu0 0.0
    %40 = vmatpush.msra.mxu0 0.0
    %41 = vmatpush.msra.mxu0 0.0
    %42 = vmatpush.msra.mxu0 0.0
    %43 = vmatpush.msra.mxu0 0.0
    %44 = vmatpush.msra.mxu0 %v20
    %45 = vmatpush.msra.mxu0 %v19
    %46 = vmatpush.msra.mxu0 %v18
    %47 = vmatpush.msra.mxu0 %v17
    %48 = vmatmul.f32.gmra.mxu0 %v27
    %v49 = vpop.f32.mrf.mxu0
    %v50 = vadd.f32 %v23, %v49
    %51 = vmatmul.f32.gmra.mxu0 %v30
    %v52 = vpop.f32.mrf.mxu0
    %v53 = vadd.f32 %v23, %v52
    %54 = vdwg.mxu0
    %v55 = vmax.f32 %v50, 0.0
    %v56 = vmax.f32 %v53, 0.0
    %57 = vst.msk [vmem:[#allocation2] sm:$0xff] %vm25, %v55
    %58 = vst.msk [vmem:[#allocation2 + $0x8] sm:$0xff] %vm25, %v56
    // Predicated region
    $region14: #{pointwise_mlp.1} parent=1 // pred_check
      _
    $region15: #{pointwise_mlp.1} parent=1 // pred_check_branch
      %60 = sbr.rel (0) target = $region17
    $region16: #{pointwise_mlp.1} parent=1 // pred_region
      %62 = vsyncadd [#allocation3], 0
      %s63 = sshll.u32 [#allocation2], 4
      %s64 = int_to_ptr.vmem [resolvable:$true] %s63
      %s65 = sshll.u32 %s3, 4
      %s66 = int_to_ptr.hbm [resolvable:$true] %s65
      %71 = dma.vmem_to_hbm [thread:$0]  %s64, 256, %s66, [#allocation3], 128, 128, 8
    $region17: #{pointwise_mlp.1} parent=1 // pred_fallthru
      _
    // Predicated region
    $region18: #{pointwise_mlp.1} parent=1 // pred_check
      _
    $region19: #{pointwise_mlp.1} parent=1 // pred_check_branch
      %73 = sbr.rel (0) target = $region21
    $region20: #{pointwise_mlp.1} parent=1 // pred_region
      %75 = dma.done [#allocation3], 256
    $region21: #{pointwise_mlp.1} parent=1 // pred_fallthru
      _
    %76 = vsyncpa [#allocation3], 1

</llo_original>
